<compile_context>
chip_gen: v7x
topology: tpu7x:2x2x1
jax: 0.10.0
libtpu: 0.0.40
codegen_flags: <defaults>
</compile_context>

<pallas_src>
import jax
import jax.numpy as jnp
from jax.experimental import pallas as pl
from jax.experimental.pallas import tpu as pltpu

_LANE = 128
_SUBLANE = 8


def _round_up(x, m):
    return ((x + m - 1) // m) * m


def _vmem_capacity_bytes():
    """Physical per-core VMEM; conservative fallback if the query is unavailable."""
    try:
        cap = int(pltpu.get_tpu_info().vmem_capacity_bytes)
        if cap > 0:
            return cap
    except Exception:
        pass
    return 64 * 1024 * 1024  # v7x per-TC size; v5e/v6e have 128 MiB


def _num_tensorcores_per_chip():
    """Heuristic: v7x exposes 2 TensorCores per chip; v5e/v6e have 1."""
    try:
        kind = jax.devices()[0].device_kind.lower()
    except Exception:
        return 1
    return 2 if "v7" in kind else 1


def _largest_divisor(n, cap, min_steps):
    """Largest d | n with d <= cap and ceil(n/d) >= min_steps (d=1 always valid)."""
    best = 1
    for d in range(1, n + 1):
        if n % d == 0 and d <= cap and pl.cdiv(n, d) >= min_steps:
            best = d
    return best


# --------------------------------------------------------------------------- #
# Kernels                                                                      #
# --------------------------------------------------------------------------- #
def se_fused_kernel(x_ref, w1_ref, b1_ref, w2_ref, b2_ref, o_ref):
    """Fused squeeze + excitation + scale for one (nb, C, HW) NCHW block."""
    x = x_ref[...]                                        # (nb, C, HW), input dtype
    hw = x_ref.shape[2]                                   # block covers full spatial extent

    # ---- squeeze: global average pool over the lane (spatial) axis, f32 acc ----
    pooled = jnp.sum(x, axis=2, dtype=jnp.float32) * (1.0 / hw)           # (nb, C)

    # ---- excitation 1: 1x1 conv (C -> mid) + ReLU on the (idle) MXU ----
    w1 = w1_ref[...].astype(jnp.float32)                                  # (mid, C)
    b1 = b1_ref[...].astype(jnp.float32)                                  # (1, mid)
    h = jax.lax.dot_general(pooled, w1, (((1,), (1,)), ((), ())),
                            precision=jax.lax.Precision.HIGHEST,
                            preferred_element_type=jnp.float32) + b1      # (nb, mid)
    h = jnp.maximum(h, 0.0)

    # ---- excitation 2: 1x1 conv (mid -> C) + Sigmoid ----
    w2 = w2_ref[...].astype(jnp.float32)                                  # (C, mid)
    b2 = b2_ref[...].astype(jnp.float32)                                  # (1, C)
    s = jax.lax.dot_general(h, w2, (((1,), (1,)), ((), ())),
                            precision=jax.lax.Precision.HIGHEST,
                            preferred_element_type=jnp.float32) + b2      # (nb, C)
    s = jax.nn.sigmoid(s)

    # ---- scale: gate broadcasts along the lane (spatial) axis; lane-dense store ----
    o_ref[...] = x * s.astype(o_ref.dtype)[:, :, None]


def se_scale_kernel(x_ref, s_ref, o_ref):
    """Elementwise scale for one (c_tile, hw_tile) block; s_ref is (c_tile, 1)."""
    o_ref[...] = x_ref[...] * s_ref[...]


# --------------------------------------------------------------------------- #
# Wrapper                                                                      #
# --------------------------------------------------------------------------- #
def se_layer(x, w1, b1, w2, b2, *, force_two_pass=False, donate_x=False):
    """x: (N, C, H, W); w1: (mid, C); b1: (mid,); w2: (C, mid); b2: (C,)."""
    N, C, H, W = x.shape
    mid = w1.shape[0]
    HW = H * W
    itemsize = jnp.dtype(x.dtype).itemsize

    vmem_cap = _vmem_capacity_bytes()
    vmem_limit = min((3 * vmem_cap) // 4, 64 * 1024 * 1024)   # 48 MiB v7x, 64 MiB v5e/v6e
    block_target = min(8 * 1024 * 1024, vmem_limit // 5)      # double-buffered in+out = 4 blocks
    fused_max_slab = vmem_limit // 5

    # NCHW straight through: merge spatial dims (free reshape), HW on lanes, C on sublanes.
    x3 = x.reshape(N, C, HW)
    per_batch_padded = _round_up(C, _SUBLANE) * _round_up(HW, _LANE) * itemsize

    io_alias = {0: 0} if donate_x else {}   # only useful with x donated at the jit boundary

    if (not force_two_pass) and per_batch_padded <= fused_max_slab:
        # ------------------------- single fused pass -------------------------
        b1_2d = b1.reshape(1, mid)
        b2_2d = b2.reshape(1, C)

        nb_cap = min(N, max(1, block_target // per_batch_padded))
        want_min_steps = 2 if (_num_tensorcores_per_chip() >= 2 and N >= 2) else 1
        nb = _largest_divisor(N, nb_cap, want_min_steps)      # nb | N -> no padded last block
        grid_n = pl.cdiv(N, nb)

        out3 = pl.pallas_call(
            se_fused_kernel,
            out_shape=jax.ShapeDtypeStruct((N, C, HW), x.dtype),
            grid_spec=pltpu.PrefetchScalarGridSpec(
                num_scalar_prefetch=0,
                grid=(grid_n,),
                in_specs=[
                    pl.BlockSpec((nb, C, HW), lambda n: (n, 0, 0)),
                    pl.BlockSpec((mid, C), lambda n: (0, 0)),
                    pl.BlockSpec((1, mid), lambda n: (0, 0)),
                    pl.BlockSpec((C, mid), lambda n: (0, 0)),
                    pl.BlockSpec((1, C), lambda n: (0, 0)),
                ],
                out_specs=pl.BlockSpec((nb, C, HW), lambda n: (n, 0, 0)),
            ),
            compiler_params=pltpu.CompilerParams(
                dimension_semantics=("parallel",),
                vmem_limit_bytes=vmem_limit),
            input_output_aliases=io_alias,
        )(x3, w1, b1_2d, w2, b2_2d)
    else:
        # ------- two-pass: tiny pool/excitation in XLA (NCHW), tiled Pallas scale -------
        w1f = w1.astype(jnp.float32)
        b1f = b1.astype(jnp.float32)
        w2f = w2.astype(jnp.float32)
        b2f = b2.astype(jnp.float32)

        pooled = jnp.mean(x3, axis=-1, dtype=jnp.float32)                     # (N, C), exact
        h = jnp.maximum(
            jax.lax.dot_general(pooled, w1f, (((1,), (1,)), ((), ())),
                                precision=jax.lax.Precision.HIGHEST,
                                preferred_element_type=jnp.float32) + b1f, 0.0)
        s = jax.nn.sigmoid(
            jax.lax.dot_general(h, w2f, (((1,), (1,)), ((), ())),
                                precision=jax.lax.Precision.HIGHEST,
                                preferred_element_type=jnp.float32) + b2f)    # (N, C)
        s3 = s.astype(x.dtype).reshape(N, C, 1)   # squeezed-batch gate; block = (c_tile, 1)

        max_elems = max(1, block_target // itemsize)
        if HW * _SUBLANE <= max_elems:
            # full spatial extent on lanes; tile channels in multiples of 8
            hw_tile = HW
            c_tile = min(C, max(_SUBLANE, ((max_elems // HW) // _SUBLANE) * _SUBLANE))
        else:
            # enormous spatial extent: 8 channel rows, tile HW in multiples of 128
            c_tile = min(C, _SUBLANE)
            hw_tile = min(HW, max(_LANE, ((max_elems // _SUBLANE) // _LANE) * _LANE))

        grid = (N, pl.cdiv(C, c_tile), pl.cdiv(HW, hw_tile))
        out3 = pl.pallas_call(
            se_scale_kernel,
            out_shape=jax.ShapeDtypeStruct((N, C, HW), x.dtype),
            grid_spec=pltpu.PrefetchScalarGridSpec(
                num_scalar_prefetch=0,
                grid=grid,
                in_specs=[
                    pl.BlockSpec((None, c_tile, hw_tile), lambda n, c, hh: (n, c, hh)),
                    pl.BlockSpec((None, c_tile, 1), lambda n, c, hh: (n, c, 0)),
                ],
                out_specs=pl.BlockSpec((None, c_tile, hw_tile), lambda n, c, hh: (n, c, hh)),
            ),
            compiler_params=pltpu.CompilerParams(
                dimension_semantics=("parallel", "parallel", "parallel"),
                vmem_limit_bytes=vmem_limit),
            input_output_aliases=io_alias,
        )(x3, s3)

    return out3.reshape(N, C, H, W)


def se_layer_ref(x, w1, b1, w2, b2):
    # Pure-JAX reference for validation (HIGHEST precision to match kernel dots).
    pooled = jnp.mean(x.astype(jnp.float32), axis=(2, 3))                       # (N, C)
    h = jnp.maximum(
        jnp.einsum("nc,mc->nm", pooled, w1.astype(jnp.float32),
                   precision=jax.lax.Precision.HIGHEST) + b1.astype(jnp.float32), 0.0)
    s = jax.nn.sigmoid(
        jnp.einsum("nm,cm->nc", h, w2.astype(jnp.float32),
                   precision=jax.lax.Precision.HIGHEST) + b2.astype(jnp.float32))
    return (x.astype(jnp.float32) * s[:, :, None, None]).astype(x.dtype)


if __name__ == "__main__":
    # Small shapes consistent with the module: ratio=16 so channels must be >= 16.
    N, C, H, W = 2, 32, 16, 16
    ratio = 16
    mid = int(C / ratio)  # 2

    key = jax.random.PRNGKey(0)
    kx, k1, k2, k3, k4 = jax.random.split(key, 5)

    x = jax.random.normal(kx, (N, C, H, W), dtype=jnp.float32)
    # 1x1 convs == dense layers on channels.
    w1 = jax.random.normal(k1, (mid, C), dtype=jnp.float32) * (1.0 / jnp.sqrt(C))
    b1 = jax.random.normal(k2, (mid,), dtype=jnp.float32) * 0.1
    w2 = jax.random.normal(k3, (C, mid), dtype=jnp.float32) * (1.0 / jnp.sqrt(mid))
    b2 = jax.random.normal(k4, (C,), dtype=jnp.float32) * 0.1

    ref = se_layer_ref(x, w1, b1, w2, b2)

    # Fused single-pass path (slab fits the VMEM block budget).
    out = jax.block_until_ready(se_layer(x, w1, b1, w2, b2))
    assert out.shape == x.shape and out.dtype == x.dtype
    # Tolerance allows for MXU f32 pass-decomposition differences in the tiny excitation dots.
    assert jnp.allclose(out, ref, atol=1e-3, rtol=1e-3), "fused path mismatch vs reference"

    # Two-pass path (exercised explicitly to validate the large-feature-map structure).
    out2 = jax.block_until_ready(se_layer(x, w1, b1, w2, b2, force_two_pass=True))
    assert jnp.allclose(out2, ref, atol=1e-3, rtol=1e-3), "two-pass path mismatch vs reference"

    print("KERNEL_OK")
</pallas_src>

<mosaic_0001>
module attributes {stable_mosaic.version = 11 : i64} {
  func.func @se_fused_kernel(%arg0: i32, %arg1: memref<2x32x256xf32, #tpu.memory_space<vmem>>, %arg2: memref<2x32xf32, #tpu.memory_space<vmem>>, %arg3: memref<1x2xf32, #tpu.memory_space<vmem>>, %arg4: memref<32x2xf32, #tpu.memory_space<vmem>>, %arg5: memref<1x32xf32, #tpu.memory_space<vmem>>, %arg6: memref<2x32x256xf32, #tpu.memory_space<vmem>>) attributes {dimension_semantics = [#tpu.dimension_semantics<parallel>], iteration_bounds = array<i64: 1>, scalar_prefetch = 0 : i64, scratch_operands = 0 : i64, tpu.core_type = #tpu.core_type<tc>, window_params = [{transform_indices = @transform_0, window_bounds = array<i64: 2, 32, 256>}, {pipeline_mode = #tpu.pipeline_mode<synchronous>, transform_indices = @transform_1, window_bounds = array<i64: 2, 32>}, {pipeline_mode = #tpu.pipeline_mode<synchronous>, transform_indices = @transform_2, window_bounds = array<i64: 1, 2>}, {pipeline_mode = #tpu.pipeline_mode<synchronous>, transform_indices = @transform_3, window_bounds = array<i64: 32, 2>}, {pipeline_mode = #tpu.pipeline_mode<synchronous>, transform_indices = @transform_4, window_bounds = array<i64: 1, 32>}, {transform_indices = @transform_5, window_bounds = array<i64: 2, 32, 256>}]} {
    %c0 = arith.constant 0 : index
    %c0_0 = arith.constant 0 : index
    %c0_1 = arith.constant 0 : index
    %0 = vector.load %arg1[%c0, %c0_0, %c0_1] : memref<2x32x256xf32, #tpu.memory_space<vmem>>, vector<2x32x256xf32>
    %cst = arith.constant dense<0.000000e+00> : vector<2x32xf32>
    %1 = vector.multi_reduction <add>, %0, %cst [2] : vector<2x32x256xf32> to vector<2x32xf32>
    %cst_2 = arith.constant 3.906250e-03 : f32
    %2 = vector.broadcast %cst_2 : f32 to vector<2x32xf32>
    %3 = arith.mulf %1, %2 : vector<2x32xf32>
    %c0_3 = arith.constant 0 : index
    %c0_4 = arith.constant 0 : index
    %4 = vector.load %arg2[%c0_3, %c0_4] : memref<2x32xf32, #tpu.memory_space<vmem>>, vector<2x32xf32>
    %c0_5 = arith.constant 0 : index
    %c0_6 = arith.constant 0 : index
    %5 = vector.load %arg3[%c0_5, %c0_6] : memref<1x2xf32, #tpu.memory_space<vmem>>, vector<1x2xf32>
    %cst_7 = arith.constant dense<0.000000e+00> : vector<2x2xf32>
    %6 = tpu.matmul %3, %4, %cst_7 {dimension_numbers = #tpu.dot_dimension_numbers<[1], [1], [0], [0], [0, 0, 1, 0], [], []>, precision = #tpu.contract_precision<fp32>} : vector<2x32xf32>, vector<2x32xf32>, vector<2x2xf32> -> vector<2x2xf32>
    %7 = vector.broadcast %5 : vector<1x2xf32> to vector<2x2xf32>
    %8 = arith.addf %6, %7 : vector<2x2xf32>
    %cst_8 = arith.constant 0.000000e+00 : f32
    %9 = vector.broadcast %cst_8 : f32 to vector<2x2xf32>
    %10 = arith.maximumf %8, %9 : vector<2x2xf32>
    %c0_9 = arith.constant 0 : index
    %c0_10 = arith.constant 0 : index
    %11 = vector.load %arg4[%c0_9, %c0_10] : memref<32x2xf32, #tpu.memory_space<vmem>>, vector<32x2xf32>
    %c0_11 = arith.constant 0 : index
    %c0_12 = arith.constant 0 : index
    %12 = vector.load %arg5[%c0_11, %c0_12] : memref<1x32xf32, #tpu.memory_space<vmem>>, vector<1x32xf32>
    %cst_13 = arith.constant dense<0.000000e+00> : vector<2x32xf32>
    %13 = tpu.matmul %10, %11, %cst_13 {dimension_numbers = #tpu.dot_dimension_numbers<[1], [1], [0], [0], [0, 0, 1, 0], [], []>, precision = #tpu.contract_precision<fp32>} : vector<2x2xf32>, vector<32x2xf32>, vector<2x32xf32> -> vector<2x32xf32>
    %14 = vector.broadcast %12 : vector<1x32xf32> to vector<2x32xf32>
    %15 = arith.addf %13, %14 : vector<2x32xf32>
    %16 = arith.negf %15 : vector<2x32xf32>
    %17 = math.exp %16 : vector<2x32xf32>
    %cst_14 = arith.constant 1.000000e+00 : f32
    %18 = vector.broadcast %cst_14 : f32 to vector<2x32xf32>
    %19 = arith.addf %18, %17 : vector<2x32xf32>
    %20 = arith.divf %18, %19 : vector<2x32xf32>
    %21 = vector.shape_cast %20 : vector<2x32xf32> to vector<2x32x1xf32>
    %22 = vector.broadcast %21 : vector<2x32x1xf32> to vector<2x32x256xf32>
    %23 = arith.mulf %0, %22 : vector<2x32x256xf32>
    %c0_15 = arith.constant 0 : index
    %c0_16 = arith.constant 0 : index
    %c0_17 = arith.constant 0 : index
    %24 = vector.load %arg6[%c0_15, %c0_16, %c0_17] : memref<2x32x256xf32, #tpu.memory_space<vmem>>, vector<2x32x256xf32>
    tpu.vector_store %arg6[%c0_15, %c0_16, %c0_17], %23 {strides = array<i32>} : memref<2x32x256xf32, #tpu.memory_space<vmem>>, vector<2x32x256xf32>,
    return
  }
  func.func @transform_0(%arg0: i32) -> (i32, i32, i32) {
    %c0_i32 = arith.constant 0 : i32
    %c0_i32_0 = arith.constant 0 : i32
    %c0_i32_1 = arith.constant 0 : i32
    return %arg0, %c0_i32, %c0_i32_0 : i32, i32, i32
  }
  func.func @transform_1(%arg0: i32) -> (i32, i32) {
    %c0_i32 = arith.constant 0 : i32
    %c0_i32_0 = arith.constant 0 : i32
    %c0_i32_1 = arith.constant 0 : i32
    return %c0_i32, %c0_i32_0 : i32, i32
  }
  func.func @transform_2(%arg0: i32) -> (i32, i32) {
    %c0_i32 = arith.constant 0 : i32
    %c0_i32_0 = arith.constant 0 : i32
    %c0_i32_1 = arith.constant 0 : i32
    return %c0_i32, %c0_i32_0 : i32, i32
  }
  func.func @transform_3(%arg0: i32) -> (i32, i32) {
    %c0_i32 = arith.constant 0 : i32
    %c0_i32_0 = arith.constant 0 : i32
    %c0_i32_1 = arith.constant 0 : i32
    return %c0_i32, %c0_i32_0 : i32, i32
  }
  func.func @transform_4(%arg0: i32) -> (i32, i32) {
    %c0_i32 = arith.constant 0 : i32
    %c0_i32_0 = arith.constant 0 : i32
    %c0_i32_1 = arith.constant 0 : i32
    return %c0_i32, %c0_i32_0 : i32, i32
  }
  func.func @transform_5(%arg0: i32) -> (i32, i32, i32) {
    %c0_i32 = arith.constant 0 : i32
    %c0_i32_0 = arith.constant 0 : i32
    %c0_i32_1 = arith.constant 0 : i32
    return %arg0, %c0_i32, %c0_i32_0 : i32, i32, i32
  }
}

</mosaic_0001>

<llo_original>
// kernel: tpu_custom_call.1
$region0: #{tpu_custom_call.1}
  #allocation0 [shape = 'u32[]', space=smem, size = 0x4, offset = 0x4, fixed_abs, tag = 'smem constant byte address 0x4 - core index']
  #allocation1 [shape = 'u32[144,128]{1,0:T(1,128)}', space=vmem, size = 0x12000, scoped, tag = 'internal scratch']
  %s0 = inlined_call_operand.hbm [shape: f32[2,32,256], index: 0, kind: input, shape index: {}]
  %s1 = inlined_call_operand.vmem [shape: f32[2,32], index: 1, kind: input, shape index: {}]
  %s2 = inlined_call_operand.vmem [shape: f32[1,2], index: 2, kind: input, shape index: {}]
  %s3 = inlined_call_operand.vmem [shape: f32[32,2], index: 3, kind: input, shape index: {}]
  %s4 = inlined_call_operand.vmem [shape: f32[1,32], index: 4, kind: input, shape index: {}]
  %s5 = inlined_call_operand.hbm [shape: f32[2,32,256], index: 5, kind: output, shape index: {}]
  %s6 = sld [smem:[#allocation0]]
  $region34: #{tpu_custom_call.1} parent=0
    _
  %s8 = ssub.s32 1, %s6
  %s9 = scalar_select 0, %s8, %s6
  $region1: #{tpu_custom_call.1} parent=0
    #allocation2 [shape = 'u8[65536]{0}', space=vmem, size = 0x10000, scoped, tag = 'input window, operand 0, single buffered']
    #allocation3 [shape = 's32[1]{0}', space=sflag, size = 0x4, scoped, tag = 'scoped memory for tpu_custom_call.1']
    #allocation4 [shape = 's32[1]{0}', space=sflag, size = 0x4, scoped, tag = 'scoped memory for tpu_custom_call.1']
    #allocation5 [shape = 'u8[65536]{0}', space=vmem, size = 0x10000, scoped, tag = 'output window, operand 0, single buffered']
    %10 = vsyncpa [#allocation3], 0
    %11 = vsyncpa [#allocation4], 0
    // Predicated region
    $region2: #{tpu_custom_call.1} parent=1 // pred_check
      _
    $region3: #{tpu_custom_call.1} parent=1 // pred_check_branch
      %13 = sbr.rel (0) target = $region5
    $region4: #{tpu_custom_call.1} parent=1 // pred_region
      %s15 = ssub.s32 2048, 2048
      %16 = vsyncadd [#allocation3], %s15
      %s17 = sshll.u32 [#allocation2], 4
      %s18 = int_to_ptr.vmem [resolvable:$true] %s17
      %23 = dma.hbm_to_vmem [thread:$0]  %s0, 2048, %s18, [#allocation3], 256, 256, 16
    $region5: #{tpu_custom_call.1} parent=1 // pred_fallthru
      _
    // Predicated region
    $region6: #{tpu_custom_call.1} parent=1 // pred_check
      _
    $region7: #{tpu_custom_call.1} parent=1 // pred_check_branch
      %25 = sbr.rel (0) target = $region9
    $region8: #{tpu_custom_call.1} parent=1 // pred_region
      _
    $region9: #{tpu_custom_call.1} parent=1 // pred_fallthru
      _
    // Predicated region
    $region10: #{tpu_custom_call.1} parent=1 // pred_check
      _
    $region11: #{tpu_custom_call.1} parent=1 // pred_check_branch
      %27 = sbr.rel (0) target = $region13
    $region12: #{tpu_custom_call.1} parent=1 // pred_region
      _
    $region13: #{tpu_custom_call.1} parent=1 // pred_fallthru
      _
    // Predicated region
    $region14: #{tpu_custom_call.1} parent=1 // pred_check
      _
    $region15: #{tpu_custom_call.1} parent=1 // pred_check_branch
      %29 = sbr.rel (0) target = $region17
    $region16: #{tpu_custom_call.1} parent=1 // pred_region
      _
    $region17: #{tpu_custom_call.1} parent=1 // pred_fallthru
      _
    // Predicated region
    $region18: #{tpu_custom_call.1} parent=1 // pred_check
      _
    $region19: #{tpu_custom_call.1} parent=1 // pred_check_branch
      %31 = sbr.rel (0) target = $region21
    $region20: #{tpu_custom_call.1} parent=1 // pred_region
      _
    $region21: #{tpu_custom_call.1} parent=1 // pred_fallthru
      _
    // Predicated region
    $region22: #{tpu_custom_call.1} parent=1 // pred_check
      _
    $region23: #{tpu_custom_call.1} parent=1 // pred_check_branch
      %33 = sbr.rel (0) target = $region25
    $region24: #{tpu_custom_call.1} parent=1 // pred_region
      %34 = dma.done [#allocation3], 2048
    $region25: #{tpu_custom_call.1} parent=1 // pred_fallthru
      _
    %v35 = vld [vmem:[#allocation2] sm:$0xff]
    %v36 = vld [vmem:[#allocation2 + $0x8] sm:$0xff]
    %v37 = vld [vmem:[#allocation2 + $0x10] sm:$0xff]
    %v38 = vld [vmem:[#allocation2 + $0x18] sm:$0xff]
    %v39 = vld [vmem:[#allocation2 + $0x20] sm:$0xff]
    %v40 = vld [vmem:[#allocation2 + $0x28] sm:$0xff]
    %v41 = vld [vmem:[#allocation2 + $0x30] sm:$0xff]
    %v42 = vld [vmem:[#allocation2 + $0x38] sm:$0xff]
    %v43 = vld [vmem:[#allocation2 + $0x40] sm:$0xff]
    %v44 = vld [vmem:[#allocation2 + $0x48] sm:$0xff]
    %v45 = vld [vmem:[#allocation2 + $0x50] sm:$0xff]
    %v46 = vld [vmem:[#allocation2 + $0x58] sm:$0xff]
    %v47 = vld [vmem:[#allocation2 + $0x60] sm:$0xff]
    %v48 = vld [vmem:[#allocation2 + $0x68] sm:$0xff]
    %v49 = vld [vmem:[#allocation2 + $0x70] sm:$0xff]
    %v50 = vld [vmem:[#allocation2 + $0x78] sm:$0xff]
    %v51 = vadd.f32 %v35, %v36
    %52 = vadd.xlane.f32.xlu0 %v51
    %v53 = vpop.xlane.xlu0 %52
    %v54 = vadd.f32 %v37, %v38
    %55 = vadd.xlane.f32.xlu0 %v54
    %v56 = vpop.xlane.xlu0 %55
    %v57 = vadd.f32 %v39, %v40
    %58 = vadd.xlane.f32.xlu0 %v57
    %v59 = vpop.xlane.xlu0 %58
    %v60 = vadd.f32 %v41, %v42
    %61 = vadd.xlane.f32.xlu0 %v60
    %v62 = vpop.xlane.xlu0 %61
    %v63 = vadd.f32 %v43, %v44
    %64 = vadd.xlane.f32.xlu0 %v63
    %v65 = vpop.xlane.xlu0 %64
    %v66 = vadd.f32 %v45, %v46
    %67 = vadd.xlane.f32.xlu0 %v66
    %v68 = vpop.xlane.xlu0 %67
    %v69 = vadd.f32 %v47, %v48
    %70 = vadd.xlane.f32.xlu0 %v69
    %v71 = vpop.xlane.xlu0 %70
    %v72 = vadd.f32 %v49, %v50
    %73 = vadd.xlane.f32.xlu0 %v72
    %v74 = vpop.xlane.xlu0 %73
    %v75 = vmul.f32 %v53, 0.00390625
    %v76 = vmul.f32 %v56, 0.00390625
    %v77 = vmul.f32 %v59, 0.00390625
    %v78 = vmul.f32 %v62, 0.00390625
    %v79 = vmul.f32 %v65, 0.00390625
    %v80 = vmul.f32 %v68, 0.00390625
    %v81 = vmul.f32 %v71, 0.00390625
    %v82 = vmul.f32 %v74, 0.00390625
    %v83 = vld [vmem:[%s1] sm:$0x3]
    %v84 = vld [vmem:[%s2] sm:$0x1]
    %v86 = vlaneseq
    %v87 = vshrl.u32 %v86, 7
    %v88 = vsub.s32 0, %v87
    %v89 = vrot.slane %v84, %v88
    %v99 = vlaneseq
    %v100 = vand.u32 %v99, 127
    %v101 = vlaneseq
    %v102 = vshrl.u32 %v101, 7
    %v103 = vsub.s32 %v100, %v102
    %v104 = vrot.slane %v75, %v103
    %v105 = vadd.s32 %v100, 4294967288
    %v106 = vlaneseq
    %v107 = vshrl.u32 %v106, 7
    %v108 = vsub.s32 %v105, %v107
    %v109 = vrot.slane %v76, %v108
    %vm110 = vcmask 130112
    %v111 = vsel %vm110, %v109, %v104
    %v112 = vadd.s32 %v100, 4294967280
    %v113 = vlaneseq
    %v114 = vshrl.u32 %v113, 7
    %v115 = vsub.s32 %v112, %v114
    %v116 = vrot.slane %v77, %v115
    %vm117 = vcmask 195712
    %v118 = vsel %vm117, %v116, %v111
    %v119 = vadd.s32 %v100, 4294967272
    %v120 = vlaneseq
    %v121 = vshrl.u32 %v120, 7
    %v122 = vsub.s32 %v119, %v121
    %v123 = vrot.slane %v78, %v122
    %vm124 = vcmask 261312
    %v125 = vsel %vm124, %v123, %v118
    %v126 = vlaneseq
    %v127 = vshrl.u32 %v126, 7
    %v128 = vsub.s32 %v100, %v127
    %v129 = vrot.slane %v79, %v128
    %v130 = vlaneseq
    %v131 = vshrl.u32 %v130, 7
    %v132 = vsub.s32 %v105, %v131
    %v133 = vrot.slane %v80, %v132
    %v134 = vsel %vm110, %v133, %v129
    %v135 = vlaneseq
    %v136 = vshrl.u32 %v135, 7
    %v137 = vsub.s32 %v112, %v136
    %v138 = vrot.slane %v81, %v137
    %v139 = vsel %vm117, %v138, %v134
    %v140 = vlaneseq
    %v141 = vshrl.u32 %v140, 7
    %v142 = vsub.s32 %v119, %v141
    %v143 = vrot.slane %v82, %v142
    %v144 = vsel %vm124, %v143, %v139
    %vm145 = vcmask 1041409
    %v146 = vsel %vm145, %v144, %v125
    %vm147 = vcmask 261120
    %v148 = vsel %vm147, %v146, 0
    %v151 = vsel %vm147, %v83, 0
    %153 = vmatprep.subr.mxu0 0.0
    %v154 = vand.u32 %v151, 4294901760
    %155 = vmatpush1.xpose.msra.mxu0 %v154
    %156 = vmatprep.subr.mxu0 0.0
    %157 = vmatpush1.xpose.msra.mxu0 0.0
    %158 = vmatprep.subr.mxu0 0.0
    %159 = vmatpush1.xpose.msra.mxu0 0.0
    %160 = vmatprep.subr.mxu0 0.0
    %161 = vmatpush1.xpose.msra.mxu0 0.0
    %162 = vmatprep.subr.mxu0 0.0
    %163 = vmatpush1.xpose.msra.mxu0 0.0
    %164 = vmatprep.subr.mxu0 0.0
    %165 = vmatpush1.xpose.msra.mxu0 0.0
    %166 = vmatprep.subr.mxu0 0.0
    %167 = vmatpush1.xpose.msra.mxu0 0.0
    %168 = vmatprep.subr.mxu0 0.0
    %169 = vmatpush1.xpose.msra.mxu0 0.0
    %170 = vmatprep.subr.mxu0 0.0
    %171 = vmatpush1.xpose.msra.mxu0 0.0
    %172 = vmatprep.subr.mxu0 0.0
    %173 = vmatpush1.xpose.msra.mxu0 0.0
    %174 = vmatprep.subr.mxu0 0.0
    %175 = vmatpush1.xpose.msra.mxu0 0.0
    %176 = vmatprep.subr.mxu0 0.0
    %177 = vmatpush1.xpose.msra.mxu0 0.0
    %178 = vmatprep.subr.mxu0 0.0
    %179 = vmatpush1.xpose.msra.mxu0 0.0
    %180 = vmatprep.subr.mxu0 0.0
    %181 = vmatpush1.xpose.msra.mxu0 0.0
    %182 = vmatprep.subr.mxu0 0.0
    %183 = vmatpush1.xpose.msra.mxu0 0.0
    %184 = vmatprep.subr.mxu0 0.0
    %185 = vmatpush1.xpose.msra.mxu0 0.0
    %186 = vmatprep.subr.mxu0 0.0
    %187 = vmatpush1.xpose.msra.mxu0 0.0
    %188 = vmatprep.subr.mxu0 0.0
    %189 = vmatpush1.xpose.msra.mxu0 0.0
    %190 = vmatprep.subr.mxu0 0.0
    %191 = vmatpush1.xpose.msra.mxu0 0.0
    %192 = vmatprep.subr.mxu0 0.0
    %193 = vmatpush1.xpose.msra.mxu0 0.0
    %194 = vmatprep.subr.mxu0 0.0
    %195 = vmatpush1.xpose.msra.mxu0 0.0
    %196 = vmatprep.subr.mxu0 0.0
    %197 = vmatpush1.xpose.msra.mxu0 0.0
    %198 = vmatprep.subr.mxu0 0.0
    %199 = vmatpush1.xpose.msra.mxu0 0.0
    %200 = vmatprep.subr.mxu0 0.0
    %201 = vmatpush1.xpose.msra.mxu0 0.0
    %202 = vmatprep.subr.mxu0 0.0
    %203 = vmatpush1.xpose.msra.mxu0 0.0
    %204 = vmatprep.subr.mxu0 0.0
    %205 = vmatpush1.xpose.msra.mxu0 0.0
    %206 = vmatprep.subr.mxu0 0.0
    %207 = vmatpush1.xpose.msra.mxu0 0.0
    %208 = vmatprep.subr.mxu0 0.0
    %209 = vmatpush1.xpose.msra.mxu0 0.0
    %210 = vmatprep.subr.mxu0 0.0
    %211 = vmatpush1.xpose.msra.mxu0 0.0
    %212 = vmatprep.subr.mxu0 0.0
    %213 = vmatpush1.xpose.msra.mxu0 0.0
    %214 = vmatprep.subr.mxu0 0.0
    %215 = vmatpush1.xpose.msra.mxu0 0.0
    %216 = vmatprep.subr.mxu0 0.0
    %217 = vmatpush1.xpose.msra.mxu0 0.0
    %218 = vmatprep.mubr.f32.mxu0 0.0
    %v219 = vand.u32 %v148, 4294901760
    %v220 = vsub.f32 %v148, %v219
    %v221 = vand.u32 %v220, 4294901760
    %v222 = vsub.f32 %v220, %v221
    %v223 = vand.u32 %v222, 4294901760
    %224 = vmatmul.mubr.f32.gmra.mrb[0].mxu0 %v223
    %v225 = vpop.f32.mrb[0].mxu0
    %v226 = vadd.f32 %v89, %v225
    %v227 = vpop.f32.mrb[0].mxu0
    %228 = vdwg.mxu0
    %229 = vmatprep.subr.mxu0 0.0
    %v230 = vand.u32 %v151, 4294901760
    %v231 = vsub.f32 %v151, %v230
    %v232 = vand.u32 %v231, 4294901760
    %v233 = vsub.f32 %v231, %v232
    %v234 = vand.u32 %v233, 4294901760
    %235 = vmatpush1.xpose.msra.mxu0 %v234
    %236 = vmatprep.subr.mxu0 0.0
    %237 = vmatpush1.xpose.msra.mxu0 0.0
    %238 = vmatprep.subr.mxu0 0.0
    %239 = vmatpush1.xpose.msra.mxu0 0.0
    %240 = vmatprep.subr.mxu0 0.0
    %241 = vmatpush1.xpose.msra.mxu0 0.0
    %242 = vmatprep.subr.mxu0 0.0
    %243 = vmatpush1.xpose.msra.mxu0 0.0
    %244 = vmatprep.subr.mxu0 0.0
    %245 = vmatpush1.xpose.msra.mxu0 0.0
    %246 = vmatprep.subr.mxu0 0.0
    %247 = vmatpush1.xpose.msra.mxu0 0.0
    %248 = vmatprep.subr.mxu0 0.0
    %249 = vmatpush1.xpose.msra.mxu0 0.0
    %250 = vmatprep.subr.mxu0 0.0
    %251 = vmatpush1.xpose.msra.mxu0 0.0
    %252 = vmatprep.subr.mxu0 0.0
    %253 = vmatpush1.xpose.msra.mxu0 0.0
    %254 = vmatprep.subr.mxu0 0.0
    %255 = vmatpush1.xpose.msra.mxu0 0.0
    %256 = vmatprep.subr.mxu0 0.0
    %257 = vmatpush1.xpose.msra.mxu0 0.0
    %258 = vmatprep.subr.mxu0 0.0
    %259 = vmatpush1.xpose.msra.mxu0 0.0
    %260 = vmatprep.subr.mxu0 0.0
    %261 = vmatpush1.xpose.msra.mxu0 0.0
    %262 = vmatprep.subr.mxu0 0.0
    %263 = vmatpush1.xpose.msra.mxu0 0.0
    %264 = vmatprep.subr.mxu0 0.0
    %265 = vmatpush1.xpose.msra.mxu0 0.0
    %266 = vmatprep.subr.mxu0 0.0
    %267 = vmatpush1.xpose.msra.mxu0 0.0
    %268 = vmatprep.subr.mxu0 0.0
    %269 = vmatpush1.xpose.msra.mxu0 0.0
    %270 = vmatprep.subr.mxu0 0.0
    %271 = vmatpush1.xpose.msra.mxu0 0.0
    %272 = vmatprep.subr.mxu0 0.0
    %273 = vmatpush1.xpose.msra.mxu0 0.0
    %274 = vmatprep.subr.mxu0 0.0
    %275 = vmatpush1.xpose.msra.mxu0 0.0
    %276 = vmatprep.subr.mxu0 0.0
    %277 = vmatpush1.xpose.msra.mxu0 0.0
    %278 = vmatprep.subr.mxu0 0.0
    %279 = vmatpush1.xpose.msra.mxu0 0.0
    %280 = vmatprep.subr.mxu0 0.0
    %281 = vmatpush1.xpose.msra.mxu0 0.0
    %282 = vmatprep.subr.mxu0 0.0
    %283 = vmatpush1.xpose.msra.mxu0 0.0
    %284 = vmatprep.subr.mxu0 0.0
    %285 = vmatpush1.xpose.msra.mxu0 0.0
    %286 = vmatprep.subr.mxu0 0.0
    %287 = vmatpush1.xpose.msra.mxu0 0.0
    %288 = vmatprep.subr.mxu0 0.0
    %289 = vmatpush1.xpose.msra.mxu0 0.0
    %290 = vmatprep.subr.mxu0 0.0
    %291 = vmatpush1.xpose.msra.mxu0 0.0
    %292 = vmatprep.subr.mxu0 0.0
    %293 = vmatpush1.xpose.msra.mxu0 0.0
    %294 = vmatprep.subr.mxu0 0.0
    %295 = vmatpush1.xpose.msra.mxu0 0.0
    %296 = vmatprep.subr.mxu0 0.0
    %297 = vmatpush1.xpose.msra.mxu0 0.0
    %298 = vmatprep.mubr.f32.mxu0 0.0
    %v299 = vand.u32 %v148, 4294901760
    %300 = vmatmul.mubr.f32.gmra.mrb[0].mxu0 %v299
    %v301 = vpop.f32.mrb[0].mxu0
    %v302 = vadd.f32 %v226, %v301
    %v303 = vpop.f32.mrb[0].mxu0
    %304 = vdwg.mxu0
    %305 = vmatprep.subr.mxu0 0.0
    %v306 = vand.u32 %v151, 4294901760
    %v307 = vsub.f32 %v151, %v306
    %308 = vmatpush1.xpose.msra.mxu0 %v307
    %309 = vmatprep.subr.mxu0 0.0
    %310 = vmatpush1.xpose.msra.mxu0 0.0
    %311 = vmatprep.subr.mxu0 0.0
    %312 = vmatpush1.xpose.msra.mxu0 0.0
    %313 = vmatprep.subr.mxu0 0.0
    %314 = vmatpush1.xpose.msra.mxu0 0.0
    %315 = vmatprep.subr.mxu0 0.0
    %316 = vmatpush1.xpose.msra.mxu0 0.0
    %317 = vmatprep.subr.mxu0 0.0
    %318 = vmatpush1.xpose.msra.mxu0 0.0
    %319 = vmatprep.subr.mxu0 0.0
    %320 = vmatpush1.xpose.msra.mxu0 0.0
    %321 = vmatprep.subr.mxu0 0.0
    %322 = vmatpush1.xpose.msra.mxu0 0.0
    %323 = vmatprep.subr.mxu0 0.0
    %324 = vmatpush1.xpose.msra.mxu0 0.0
    %325 = vmatprep.subr.mxu0 0.0
    %326 = vmatpush1.xpose.msra.mxu0 0.0
    %327 = vmatprep.subr.mxu0 0.0
    %328 = vmatpush1.xpose.msra.mxu0 0.0
    %329 = vmatprep.subr.mxu0 0.0
    %330 = vmatpush1.xpose.msra.mxu0 0.0
    %331 = vmatprep.subr.mxu0 0.0
    %332 = vmatpush1.xpose.msra.mxu0 0.0
    %333 = vmatprep.subr.mxu0 0.0
    %334 = vmatpush1.xpose.msra.mxu0 0.0
    %335 = vmatprep.subr.mxu0 0.0
    %336 = vmatpush1.xpose.msra.mxu0 0.0
    %337 = vmatprep.subr.mxu0 0.0
    %338 = vmatpush1.xpose.msra.mxu0 0.0
    %339 = vmatprep.subr.mxu0 0.0
    %340 = vmatpush1.xpose.msra.mxu0 0.0
    %341 = vmatprep.subr.mxu0 0.0
    %342 = vmatpush1.xpose.msra.mxu0 0.0
    %343 = vmatprep.subr.mxu0 0.0
    %344 = vmatpush1.xpose.msra.mxu0 0.0
    %345 = vmatprep.subr.mxu0 0.0
    %346 = vmatpush1.xpose.msra.mxu0 0.0
    %347 = vmatprep.subr.mxu0 0.0
    %348 = vmatpush1.xpose.msra.mxu0 0.0
    %349 = vmatprep.subr.mxu0 0.0
    %350 = vmatpush1.xpose.msra.mxu0 0.0
    %351 = vmatprep.subr.mxu0 0.0
    %352 = vmatpush1.xpose.msra.mxu0 0.0
    %353 = vmatprep.subr.mxu0 0.0
    %354 = vmatpush1.xpose.msra.mxu0 0.0
    %355 = vmatprep.subr.mxu0 0.0
    %356 = vmatpush1.xpose.msra.mxu0 0.0
    %357 = vmatprep.subr.mxu0 0.0
    %358 = vmatpush1.xpose.msra.mxu0 0.0
    %359 = vmatprep.subr.mxu0 0.0
    %360 = vmatpush1.xpose.msra.mxu0 0.0
    %361 = vmatprep.subr.mxu0 0.0
    %362 = vmatpush1.xpose.msra.mxu0 0.0
    %363 = vmatprep.subr.mxu0 0.0
    %364 = vmatpush1.xpose.msra.mxu0 0.0
    %365 = vmatprep.subr.mxu0 0.0
    %366 = vmatpush1.xpose.msra.mxu0 0.0
    %367 = vmatprep.subr.mxu0 0.0
    %368 = vmatpush1.xpose.msra.mxu0 0.0
    %369 = vmatprep.subr.mxu0 0.0
    %370 = vmatpush1.xpose.msra.mxu0 0.0
    %371 = vmatprep.mubr.f32.mxu0 0.0
    %v372 = vand.u32 %v148, 4294901760
    %v373 = vsub.f32 %v148, %v372
    %374 = vmatmul.mubr.f32.gmra.mrb[0].mxu0 %v373
    %v375 = vpop.f32.mrb[0].mxu0
    %v376 = vadd.f32 %v302, %v375
    %v377 = vpop.f32.mrb[0].mxu0
    %378 = vdwg.mxu0
    %379 = vmatprep.subr.mxu0 0.0
    %v380 = vand.u32 %v151, 4294901760
    %381 = vmatpush1.xpose.msra.mxu0 %v380
    %382 = vmatprep.subr.mxu0 0.0
    %383 = vmatpush1.xpose.msra.mxu0 0.0
    %384 = vmatprep.subr.mxu0 0.0
    %385 = vmatpush1.xpose.msra.mxu0 0.0
    %386 = vmatprep.subr.mxu0 0.0
    %387 = vmatpush1.xpose.msra.mxu0 0.0
    %388 = vmatprep.subr.mxu0 0.0
    %389 = vmatpush1.xpose.msra.mxu0 0.0
    %390 = vmatprep.subr.mxu0 0.0
    %391 = vmatpush1.xpose.msra.mxu0 0.0
    %392 = vmatprep.subr.mxu0 0.0
    %393 = vmatpush1.xpose.msra.mxu0 0.0
    %394 = vmatprep.subr.mxu0 0.0
    %395 = vmatpush1.xpose.msra.mxu0 0.0
    %396 = vmatprep.subr.mxu0 0.0
    %397 = vmatpush1.xpose.msra.mxu0 0.0
    %398 = vmatprep.subr.mxu0 0.0
    %399 = vmatpush1.xpose.msra.mxu0 0.0
    %400 = vmatprep.subr.mxu0 0.0
    %401 = vmatpush1.xpose.msra.mxu0 0.0
    %402 = vmatprep.subr.mxu0 0.0
    %403 = vmatpush1.xpose.msra.mxu0 0.0
    %404 = vmatprep.subr.mxu0 0.0
    %405 = vmatpush1.xpose.msra.mxu0 0.0
    %406 = vmatprep.subr.mxu0 0.0
    %407 = vmatpush1.xpose.msra.mxu0 0.0
    %408 = vmatprep.subr.mxu0 0.0
    %409 = vmatpush1.xpose.msra.mxu0 0.0
    %410 = vmatprep.subr.mxu0 0.0
    %411 = vmatpush1.xpose.msra.mxu0 0.0
    %412 = vmatprep.subr.mxu0 0.0
    %413 = vmatpush1.xpose.msra.mxu0 0.0
    %414 = vmatprep.subr.mxu0 0.0
    %415 = vmatpush1.xpose.msra.mxu0 0.0
    %416 = vmatprep.subr.mxu0 0.0
    %417 = vmatpush1.xpose.msra.mxu0 0.0
    %418 = vmatprep.subr.mxu0 0.0
    %419 = vmatpush1.xpose.msra.mxu0 0.0
    %420 = vmatprep.subr.mxu0 0.0
    %421 = vmatpush1.xpose.msra.mxu0 0.0
    %422 = vmatprep.subr.mxu0 0.0
    %423 = vmatpush1.xpose.msra.mxu0 0.0
    %424 = vmatprep.subr.mxu0 0.0
    %425 = vmatpush1.xpose.msra.mxu0 0.0
    %426 = vmatprep.subr.mxu0 0.0
    %427 = vmatpush1.xpose.msra.mxu0 0.0
    %428 = vmatprep.subr.mxu0 0.0
    %429 = vmatpush1.xpose.msra.mxu0 0.0
    %430 = vmatprep.subr.mxu0 0.0
    %431 = vmatpush1.xpose.msra.mxu0 0.0
    %432 = vmatprep.subr.mxu0 0.0
    %433 = vmatpush1.xpose.msra.mxu0 0.0
    %434 = vmatprep.subr.mxu0 0.0
    %435 = vmatpush1.xpose.msra.mxu0 0.0
    %436 = vmatprep.subr.mxu0 0.0
    %437 = vmatpush1.xpose.msra.mxu0 0.0
    %438 = vmatprep.subr.mxu0 0.0
    %439 = vmatpush1.xpose.msra.mxu0 0.0
    %440 = vmatprep.subr.mxu0 0.0
    %441 = vmatpush1.xpose.msra.mxu0 0.0
    %442 = vmatprep.subr.mxu0 0.0
    %443 = vmatpush1.xpose.msra.mxu0 0.0
    %444 = vmatprep.mubr.f32.mxu0 0.0
    %v445 = vand.u32 %v148, 4294901760
    %v446 = vsub.f32 %v148, %v445
    %v447 = vand.u32 %v446, 4294901760
    %448 = vmatmul.mubr.f32.gmra.mrb[0].mxu0 %v447
    %v449 = vpop.f32.mrb[0].mxu0
    %v450 = vadd.f32 %v376, %v449
    %v451 = vpop.f32.mrb[0].mxu0
    %452 = vdwg.mxu0
    %453 = vmatprep.subr.mxu0 0.0
    %v454 = vand.u32 %v151, 4294901760
    %v455 = vsub.f32 %v151, %v454
    %v456 = vand.u32 %v455, 4294901760
    %457 = vmatpush1.xpose.msra.mxu0 %v456
    %458 = vmatprep.subr.mxu0 0.0
    %459 = vmatpush1.xpose.msra.mxu0 0.0
    %460 = vmatprep.subr.mxu0 0.0
    %461 = vmatpush1.xpose.msra.mxu0 0.0
    %462 = vmatprep.subr.mxu0 0.0
    %463 = vmatpush1.xpose.msra.mxu0 0.0
    %464 = vmatprep.subr.mxu0 0.0
    %465 = vmatpush1.xpose.msra.mxu0 0.0
    %466 = vmatprep.subr.mxu0 0.0
    %467 = vmatpush1.xpose.msra.mxu0 0.0
    %468 = vmatprep.subr.mxu0 0.0
    %469 = vmatpush1.xpose.msra.mxu0 0.0
    %470 = vmatprep.subr.mxu0 0.0
    %471 = vmatpush1.xpose.msra.mxu0 0.0
    %472 = vmatprep.subr.mxu0 0.0
    %473 = vmatpush1.xpose.msra.mxu0 0.0
    %474 = vmatprep.subr.mxu0 0.0
    %475 = vmatpush1.xpose.msra.mxu0 0.0
    %476 = vmatprep.subr.mxu0 0.0
    %477 = vmatpush1.xpose.msra.mxu0 0.0
    %478 = vmatprep.subr.mxu0 0.0
    %479 = vmatpush1.xpose.msra.mxu0 0.0
    %480 = vmatprep.subr.mxu0 0.0
    %481 = vmatpush1.xpose.msra.mxu0 0.0
    %482 = vmatprep.subr.mxu0 0.0
    %483 = vmatpush1.xpose.msra.mxu0 0.0
    %484 = vmatprep.subr.mxu0 0.0
    %485 = vmatpush1.xpose.msra.mxu0 0.0
    %486 = vmatprep.subr.mxu0 0.0
    %487 = vmatpush1.xpose.msra.mxu0 0.0
    %488 = vmatprep.subr.mxu0 0.0
    %489 = vmatpush1.xpose.msra.mxu0 0.0
    %490 = vmatprep.subr.mxu0 0.0
    %491 = vmatpush1.xpose.msra.mxu0 0.0
    %492 = vmatprep.subr.mxu0 0.0
    %493 = vmatpush1.xpose.msra.mxu0 0.0
    %494 = vmatprep.subr.mxu0 0.0
    %495 = vmatpush1.xpose.msra.mxu0 0.0
    %496 = vmatprep.subr.mxu0 0.0
    %497 = vmatpush1.xpose.msra.mxu0 0.0
    %498 = vmatprep.subr.mxu0 0.0
    %499 = vmatpush1.xpose.msra.mxu0 0.0
    %500 = vmatprep.subr.mxu0 0.0
    %501 = vmatpush1.xpose.msra.mxu0 0.0
    %502 = vmatprep.subr.mxu0 0.0
    %503 = vmatpush1.xpose.msra.mxu0 0.0
    %504 = vmatprep.subr.mxu0 0.0
    %505 = vmatpush1.xpose.msra.mxu0 0.0
    %506 = vmatprep.subr.mxu0 0.0
    %507 = vmatpush1.xpose.msra.mxu0 0.0
    %508 = vmatprep.subr.mxu0 0.0
    %509 = vmatpush1.xpose.msra.mxu0 0.0
    %510 = vmatprep.subr.mxu0 0.0
    %511 = vmatpush1.xpose.msra.mxu0 0.0
    %512 = vmatprep.subr.mxu0 0.0
    %513 = vmatpush1.xpose.msra.mxu0 0.0
    %514 = vmatprep.subr.mxu0 0.0
    %515 = vmatpush1.xpose.msra.mxu0 0.0
    %516 = vmatprep.subr.mxu0 0.0
    %517 = vmatpush1.xpose.msra.mxu0 0.0
    %518 = vmatprep.subr.mxu0 0.0
    %519 = vmatpush1.xpose.msra.mxu0 0.0
    %520 = vmatprep.mubr.f32.mxu0 0.0
    %v521 = vand.u32 %v148, 4294901760
    %522 = vmatmul.mubr.f32.gmra.mrb[0].mxu0 %v521
    %v523 = vpop.f32.mrb[0].mxu0
    %v524 = vadd.f32 %v450, %v523
    %v525 = vpop.f32.mrb[0].mxu0
    %526 = vdwg.mxu0
    %527 = vmatprep.subr.mxu0 0.0
    %v528 = vand.u32 %v151, 4294901760
    %529 = vmatpush1.xpose.msra.mxu0 %v528
    %530 = vmatprep.subr.mxu0 0.0
    %531 = vmatpush1.xpose.msra.mxu0 0.0
    %532 = vmatprep.subr.mxu0 0.0
    %533 = vmatpush1.xpose.msra.mxu0 0.0
    %534 = vmatprep.subr.mxu0 0.0
    %535 = vmatpush1.xpose.msra.mxu0 0.0
    %536 = vmatprep.subr.mxu0 0.0
    %537 = vmatpush1.xpose.msra.mxu0 0.0
    %538 = vmatprep.subr.mxu0 0.0
    %539 = vmatpush1.xpose.msra.mxu0 0.0
    %540 = vmatprep.subr.mxu0 0.0
    %541 = vmatpush1.xpose.msra.mxu0 0.0
    %542 = vmatprep.subr.mxu0 0.0
    %543 = vmatpush1.xpose.msra.mxu0 0.0
    %544 = vmatprep.subr.mxu0 0.0
    %545 = vmatpush1.xpose.msra.mxu0 0.0
    %546 = vmatprep.subr.mxu0 0.0
    %547 = vmatpush1.xpose.msra.mxu0 0.0
    %548 = vmatprep.subr.mxu0 0.0
    %549 = vmatpush1.xpose.msra.mxu0 0.0
    %550 = vmatprep.subr.mxu0 0.0
    %551 = vmatpush1.xpose.msra.mxu0 0.0
    %552 = vmatprep.subr.mxu0 0.0
    %553 = vmatpush1.xpose.msra.mxu0 0.0
    %554 = vmatprep.subr.mxu0 0.0
    %555 = vmatpush1.xpose.msra.mxu0 0.0
    %556 = vmatprep.subr.mxu0 0.0
    %557 = vmatpush1.xpose.msra.mxu0 0.0
    %558 = vmatprep.subr.mxu0 0.0
    %559 = vmatpush1.xpose.msra.mxu0 0.0
    %560 = vmatprep.subr.mxu0 0.0
    %561 = vmatpush1.xpose.msra.mxu0 0.0
    %562 = vmatprep.subr.mxu0 0.0
    %563 = vmatpush1.xpose.msra.mxu0 0.0
    %564 = vmatprep.subr.mxu0 0.0
    %565 = vmatpush1.xpose.msra.mxu0 0.0
    %566 = vmatprep.subr.mxu0 0.0
    %567 = vmatpush1.xpose.msra.mxu0 0.0
    %568 = vmatprep.subr.mxu0 0.0
    %569 = vmatpush1.xpose.msra.mxu0 0.0
    %570 = vmatprep.subr.mxu0 0.0
    %571 = vmatpush1.xpose.msra.mxu0 0.0
    %572 = vmatprep.subr.mxu0 0.0
    %573 = vmatpush1.xpose.msra.mxu0 0.0
    %574 = vmatprep.subr.mxu0 0.0
    %575 = vmatpush1.xpose.msra.mxu0 0.0
    %576 = vmatprep.subr.mxu0 0.0
    %577 = vmatpush1.xpose.msra.mxu0 0.0
    %578 = vmatprep.subr.mxu0 0.0
    %579 = vmatpush1.xpose.msra.mxu0 0.0
    %580 = vmatprep.subr.mxu0 0.0
    %581 = vmatpush1.xpose.msra.mxu0 0.0
    %582 = vmatprep.subr.mxu0 0.0
    %583 = vmatpush1.xpose.msra.mxu0 0.0
    %584 = vmatprep.subr.mxu0 0.0
    %585 = vmatpush1.xpose.msra.mxu0 0.0
    %586 = vmatprep.subr.mxu0 0.0
    %587 = vmatpush1.xpose.msra.mxu0 0.0
    %588 = vmatprep.subr.mxu0 0.0
    %589 = vmatpush1.xpose.msra.mxu0 0.0
    %590 = vmatprep.subr.mxu0 0.0
    %591 = vmatpush1.xpose.msra.mxu0 0.0
    %592 = vmatprep.mubr.f32.mxu0 0.0
    %v593 = vand.u32 %v148, 4294901760
    %594 = vmatmul.mubr.f32.gmra.mrb[0].mxu0 %v593
    %v595 = vpop.f32.mrb[0].mxu0
    %v596 = vadd.f32 %v524, %v595
    %v597 = vpop.f32.mrb[0].mxu0
    %598 = vdwg.mxu0
    %v599 = vmax.f32 %v596, 0.0
    %v600 = vld [vmem:[%s3] sm:$0xff]
    %v601 = vld [vmem:[%s3 + $0x8] sm:$0xff]
    %v602 = vld [vmem:[%s3 + $0x10] sm:$0xff]
    %v603 = vld [vmem:[%s3 + $0x18] sm:$0xff]
    %v604 = vld [vmem:[%s4] sm:$0x1]
    %v606 = vlaneseq
    %v607 = vshrl.u32 %v606, 7
    %v608 = vsub.s32 0, %v607
    %v609 = vrot.slane %v604, %v608
    %vm611 = vcmask 15360
    %v613 = vsel %vm611, %v599, 0
    %v616 = vsel %vm611, %v600, 0
    %v619 = vsel %vm611, %v601, 0
    %v622 = vsel %vm611, %v602, 0
    %v625 = vsel %vm611, %v603, 0
    %627 = vmatprep.subr.mxu0 0.0
    %v628 = vand.u32 %v616, 4294901760
    %629 = vmatpush1.xpose.msra.mxu0 %v628
    %630 = vmatprep.subr.mxu0 0.0
    %v631 = vand.u32 %v619, 4294901760
    %632 = vmatpush1.xpose.msra.mxu0 %v631
    %633 = vmatprep.subr.mxu0 0.0
    %v634 = vand.u32 %v622, 4294901760
    %635 = vmatpush1.xpose.msra.mxu0 %v634
    %636 = vmatprep.subr.mxu0 0.0
    %v637 = vand.u32 %v625, 4294901760
    %638 = vmatpush1.xpose.msra.mxu0 %v637
    %639 = vmatprep.subr.mxu0 0.0
    %640 = vmatpush1.xpose.msra.mxu0 0.0
    %641 = vmatprep.subr.mxu0 0.0
    %642 = vmatpush1.xpose.msra.mxu0 0.0
    %643 = vmatprep.subr.mxu0 0.0
    %644 = vmatpush1.xpose.msra.mxu0 0.0
    %645 = vmatprep.subr.mxu0 0.0
    %646 = vmatpush1.xpose.msra.mxu0 0.0
    %647 = vmatprep.subr.mxu0 0.0
    %648 = vmatpush1.xpose.msra.mxu0 0.0
    %649 = vmatprep.subr.mxu0 0.0
    %650 = vmatpush1.xpose.msra.mxu0 0.0
    %651 = vmatprep.subr.mxu0 0.0
    %652 = vmatpush1.xpose.msra.mxu0 0.0
    %653 = vmatprep.subr.mxu0 0.0
    %654 = vmatpush1.xpose.msra.mxu0 0.0
    %655 = vmatprep.subr.mxu0 0.0
    %656 = vmatpush1.xpose.msra.mxu0 0.0
    %657 = vmatprep.subr.mxu0 0.0
    %658 = vmatpush1.xpose.msra.mxu0 0.0
    %659 = vmatprep.subr.mxu0 0.0
    %660 = vmatpush1.xpose.msra.mxu0 0.0
    %661 = vmatprep.subr.mxu0 0.0
    %662 = vmatpush1.xpose.msra.mxu0 0.0
    %663 = vmatprep.subr.mxu0 0.0
    %664 = vmatpush1.xpose.msra.mxu0 0.0
    %665 = vmatprep.subr.mxu0 0.0
    %666 = vmatpush1.xpose.msra.mxu0 0.0
    %667 = vmatprep.subr.mxu0 0.0
    %668 = vmatpush1.xpose.msra.mxu0 0.0
    %669 = vmatprep.subr.mxu0 0.0
    %670 = vmatpush1.xpose.msra.mxu0 0.0
    %671 = vmatprep.subr.mxu0 0.0
    %672 = vmatpush1.xpose.msra.mxu0 0.0
    %673 = vmatprep.subr.mxu0 0.0
    %674 = vmatpush1.xpose.msra.mxu0 0.0
    %675 = vmatprep.subr.mxu0 0.0
    %676 = vmatpush1.xpose.msra.mxu0 0.0
    %677 = vmatprep.subr.mxu0 0.0
    %678 = vmatpush1.xpose.msra.mxu0 0.0
    %679 = vmatprep.subr.mxu0 0.0
    %680 = vmatpush1.xpose.msra.mxu0 0.0
    %681 = vmatprep.subr.mxu0 0.0
    %682 = vmatpush1.xpose.msra.mxu0 0.0
    %683 = vmatprep.subr.mxu0 0.0
    %684 = vmatpush1.xpose.msra.mxu0 0.0
    %685 = vmatprep.subr.mxu0 0.0
    %686 = vmatpush1.xpose.msra.mxu0 0.0
    %687 = vmatprep.subr.mxu0 0.0
    %688 = vmatpush1.xpose.msra.mxu0 0.0
    %689 = vmatprep.subr.mxu0 0.0
    %690 = vmatpush1.xpose.msra.mxu0 0.0
    %691 = vmatprep.subr.mxu0 0.0
    %692 = vmatpush1.xpose.msra.mxu0 0.0
    %693 = vmatprep.subr.mxu0 0.0
    %694 = vmatpush1.xpose.msra.mxu0 0.0
    %695 = vmatprep.mubr.f32.mxu0 0.0
    %v696 = vand.u32 %v613, 4294901760
    %v697 = vsub.f32 %v613, %v696
    %v698 = vand.u32 %v697, 4294901760
    %v699 = vsub.f32 %v697, %v698
    %v700 = vand.u32 %v699, 4294901760
    %701 = vmatmul.mubr.f32.gmra.mrb[0].mxu0 %v700
    %v702 = vpop.f32.mrb[0].mxu0
    %v703 = vadd.f32 %v609, %v702
    %v704 = vpop.f32.mrb[0].mxu0
    %705 = vdwg.mxu0
    %706 = vmatprep.subr.mxu0 0.0
    %v707 = vand.u32 %v616, 4294901760
    %v708 = vsub.f32 %v616, %v707
    %v709 = vand.u32 %v708, 4294901760
    %v710 = vsub.f32 %v708, %v709
    %v711 = vand.u32 %v710, 4294901760
    %712 = vmatpush1.xpose.msra.mxu0 %v711
    %713 = vmatprep.subr.mxu0 0.0
    %v714 = vand.u32 %v619, 4294901760
    %v715 = vsub.f32 %v619, %v714
    %v716 = vand.u32 %v715, 4294901760
    %v717 = vsub.f32 %v715, %v716
    %v718 = vand.u32 %v717, 4294901760
    %719 = vmatpush1.xpose.msra.mxu0 %v718
    %720 = vmatprep.subr.mxu0 0.0
    %v721 = vand.u32 %v622, 4294901760
    %v722 = vsub.f32 %v622, %v721
    %v723 = vand.u32 %v722, 4294901760
    %v724 = vsub.f32 %v722, %v723
    %v725 = vand.u32 %v724, 4294901760
    %726 = vmatpush1.xpose.msra.mxu0 %v725
    %727 = vmatprep.subr.mxu0 0.0
    %v728 = vand.u32 %v625, 4294901760
    %v729 = vsub.f32 %v625, %v728
    %v730 = vand.u32 %v729, 4294901760
    %v731 = vsub.f32 %v729, %v730
    %v732 = vand.u32 %v731, 4294901760
    %733 = vmatpush1.xpose.msra.mxu0 %v732
    %734 = vmatprep.subr.mxu0 0.0
    %735 = vmatpush1.xpose.msra.mxu0 0.0
    %736 = vmatprep.subr.mxu0 0.0
    %737 = vmatpush1.xpose.msra.mxu0 0.0
    %738 = vmatprep.subr.mxu0 0.0
    %739 = vmatpush1.xpose.msra.mxu0 0.0
    %740 = vmatprep.subr.mxu0 0.0
    %741 = vmatpush1.xpose.msra.mxu0 0.0
    %742 = vmatprep.subr.mxu0 0.0
    %743 = vmatpush1.xpose.msra.mxu0 0.0
    %744 = vmatprep.subr.mxu0 0.0
    %745 = vmatpush1.xpose.msra.mxu0 0.0
    %746 = vmatprep.subr.mxu0 0.0
    %747 = vmatpush1.xpose.msra.mxu0 0.0
    %748 = vmatprep.subr.mxu0 0.0
    %749 = vmatpush1.xpose.msra.mxu0 0.0
    %750 = vmatprep.subr.mxu0 0.0
    %751 = vmatpush1.xpose.msra.mxu0 0.0
    %752 = vmatprep.subr.mxu0 0.0
    %753 = vmatpush1.xpose.msra.mxu0 0.0
    %754 = vmatprep.subr.mxu0 0.0
    %755 = vmatpush1.xpose.msra.mxu0 0.0
    %756 = vmatprep.subr.mxu0 0.0
    %757 = vmatpush1.xpose.msra.mxu0 0.0
    %758 = vmatprep.subr.mxu0 0.0
    %759 = vmatpush1.xpose.msra.mxu0 0.0
    %760 = vmatprep.subr.mxu0 0.0
    %761 = vmatpush1.xpose.msra.mxu0 0.0
    %762 = vmatprep.subr.mxu0 0.0
    %763 = vmatpush1.xpose.msra.mxu0 0.0
    %764 = vmatprep.subr.mxu0 0.0
    %765 = vmatpush1.xpose.msra.mxu0 0.0
    %766 = vmatprep.subr.mxu0 0.0
    %767 = vmatpush1.xpose.msra.mxu0 0.0
    %768 = vmatprep.subr.mxu0 0.0
    %769 = vmatpush1.xpose.msra.mxu0 0.0
    %770 = vmatprep.subr.mxu0 0.0
    %771 = vmatpush1.xpose.msra.mxu0 0.0
    %772 = vmatprep.subr.mxu0 0.0
    %773 = vmatpush1.xpose.msra.mxu0 0.0
    %774 = vmatprep.subr.mxu0 0.0
    %775 = vmatpush1.xpose.msra.mxu0 0.0
    %776 = vmatprep.subr.mxu0 0.0
    %777 = vmatpush1.xpose.msra.mxu0 0.0
    %778 = vmatprep.subr.mxu0 0.0
    %779 = vmatpush1.xpose.msra.mxu0 0.0
    %780 = vmatprep.subr.mxu0 0.0
    %781 = vmatpush1.xpose.msra.mxu0 0.0
    %782 = vmatprep.subr.mxu0 0.0
    %783 = vmatpush1.xpose.msra.mxu0 0.0
    %784 = vmatprep.subr.mxu0 0.0
    %785 = vmatpush1.xpose.msra.mxu0 0.0
    %786 = vmatprep.subr.mxu0 0.0
    %787 = vmatpush1.xpose.msra.mxu0 0.0
    %788 = vmatprep.subr.mxu0 0.0
    %789 = vmatpush1.xpose.msra.mxu0 0.0
    %790 = vmatprep.mubr.f32.mxu0 0.0
    %v791 = vand.u32 %v613, 4294901760
    %792 = vmatmul.mubr.f32.gmra.mrb[0].mxu0 %v791
    %v793 = vpop.f32.mrb[0].mxu0
    %v794 = vadd.f32 %v703, %v793
    %v795 = vpop.f32.mrb[0].mxu0
    %796 = vdwg.mxu0
    %797 = vmatprep.subr.mxu0 0.0
    %v798 = vand.u32 %v616, 4294901760
    %v799 = vsub.f32 %v616, %v798
    %800 = vmatpush1.xpose.msra.mxu0 %v799
    %801 = vmatprep.subr.mxu0 0.0
    %v802 = vand.u32 %v619, 4294901760
    %v803 = vsub.f32 %v619, %v802
    %804 = vmatpush1.xpose.msra.mxu0 %v803
    %805 = vmatprep.subr.mxu0 0.0
    %v806 = vand.u32 %v622, 4294901760
    %v807 = vsub.f32 %v622, %v806
    %808 = vmatpush1.xpose.msra.mxu0 %v807
    %809 = vmatprep.subr.mxu0 0.0
    %v810 = vand.u32 %v625, 4294901760
    %v811 = vsub.f32 %v625, %v810
    %812 = vmatpush1.xpose.msra.mxu0 %v811
    %813 = vmatprep.subr.mxu0 0.0
    %814 = vmatpush1.xpose.msra.mxu0 0.0
    %815 = vmatprep.subr.mxu0 0.0
    %816 = vmatpush1.xpose.msra.mxu0 0.0
    %817 = vmatprep.subr.mxu0 0.0
    %818 = vmatpush1.xpose.msra.mxu0 0.0
    %819 = vmatprep.subr.mxu0 0.0
    %820 = vmatpush1.xpose.msra.mxu0 0.0
    %821 = vmatprep.subr.mxu0 0.0
    %822 = vmatpush1.xpose.msra.mxu0 0.0
    %823 = vmatprep.subr.mxu0 0.0
    %824 = vmatpush1.xpose.msra.mxu0 0.0
    %825 = vmatprep.subr.mxu0 0.0
    %826 = vmatpush1.xpose.msra.mxu0 0.0
    %827 = vmatprep.subr.mxu0 0.0
    %828 = vmatpush1.xpose.msra.mxu0 0.0
    %829 = vmatprep.subr.mxu0 0.0
    %830 = vmatpush1.xpose.msra.mxu0 0.0
    %831 = vmatprep.subr.mxu0 0.0
    %832 = vmatpush1.xpose.msra.mxu0 0.0
    %833 = vmatprep.subr.mxu0 0.0
    %834 = vmatpush1.xpose.msra.mxu0 0.0
    %835 = vmatprep.subr.mxu0 0.0
    %836 = vmatpush1.xpose.msra.mxu0 0.0
    %837 = vmatprep.subr.mxu0 0.0
    %838 = vmatpush1.xpose.msra.mxu0 0.0
    %839 = vmatprep.subr.mxu0 0.0
    %840 = vmatpush1.xpose.msra.mxu0 0.0
    %841 = vmatprep.subr.mxu0 0.0
    %842 = vmatpush1.xpose.msra.mxu0 0.0
    %843 = vmatprep.subr.mxu0 0.0
    %844 = vmatpush1.xpose.msra.mxu0 0.0
    %845 = vmatprep.subr.mxu0 0.0
    %846 = vmatpush1.xpose.msra.mxu0 0.0
    %847 = vmatprep.subr.mxu0 0.0
    %848 = vmatpush1.xpose.msra.mxu0 0.0
    %849 = vmatprep.subr.mxu0 0.0
    %850 = vmatpush1.xpose.msra.mxu0 0.0
    %851 = vmatprep.subr.mxu0 0.0
    %852 = vmatpush1.xpose.msra.mxu0 0.0
    %853 = vmatprep.subr.mxu0 0.0
    %854 = vmatpush1.xpose.msra.mxu0 0.0
    %855 = vmatprep.subr.mxu0 0.0
    %856 = vmatpush1.xpose.msra.mxu0 0.0
    %857 = vmatprep.subr.mxu0 0.0
    %858 = vmatpush1.xpose.msra.mxu0 0.0
    %859 = vmatprep.subr.mxu0 0.0
    %860 = vmatpush1.xpose.msra.mxu0 0.0
    %861 = vmatprep.subr.mxu0 0.0
    %862 = vmatpush1.xpose.msra.mxu0 0.0
    %863 = vmatprep.subr.mxu0 0.0
    %864 = vmatpush1.xpose.msra.mxu0 0.0
    %865 = vmatprep.subr.mxu0 0.0
    %866 = vmatpush1.xpose.msra.mxu0 0.0
    %867 = vmatprep.subr.mxu0 0.0
    %868 = vmatpush1.xpose.msra.mxu0 0.0
    %869 = vmatprep.mubr.f32.mxu0 0.0
    %v870 = vand.u32 %v613, 4294901760
    %v871 = vsub.f32 %v613, %v870
    %872 = vmatmul.mubr.f32.gmra.mrb[0].mxu0 %v871
    %v873 = vpop.f32.mrb[0].mxu0
    %v874 = vadd.f32 %v794, %v873
    %v875 = vpop.f32.mrb[0].mxu0
    %876 = vdwg.mxu0
    %877 = vmatprep.subr.mxu0 0.0
    %v878 = vand.u32 %v616, 4294901760
    %879 = vmatpush1.xpose.msra.mxu0 %v878
    %880 = vmatprep.subr.mxu0 0.0
    %v881 = vand.u32 %v619, 4294901760
    %882 = vmatpush1.xpose.msra.mxu0 %v881
    %883 = vmatprep.subr.mxu0 0.0
    %v884 = vand.u32 %v622, 4294901760
    %885 = vmatpush1.xpose.msra.mxu0 %v884
    %886 = vmatprep.subr.mxu0 0.0
    %v887 = vand.u32 %v625, 4294901760
    %888 = vmatpush1.xpose.msra.mxu0 %v887
    %889 = vmatprep.subr.mxu0 0.0
    %890 = vmatpush1.xpose.msra.mxu0 0.0
    %891 = vmatprep.subr.mxu0 0.0
    %892 = vmatpush1.xpose.msra.mxu0 0.0
    %893 = vmatprep.subr.mxu0 0.0
    %894 = vmatpush1.xpose.msra.mxu0 0.0
    %895 = vmatprep.subr.mxu0 0.0
    %896 = vmatpush1.xpose.msra.mxu0 0.0
    %897 = vmatprep.subr.mxu0 0.0
    %898 = vmatpush1.xpose.msra.mxu0 0.0
    %899 = vmatprep.subr.mxu0 0.0
    %900 = vmatpush1.xpose.msra.mxu0 0.0
    %901 = vmatprep.subr.mxu0 0.0
    %902 = vmatpush1.xpose.msra.mxu0 0.0
    %903 = vmatprep.subr.mxu0 0.0
    %904 = vmatpush1.xpose.msra.mxu0 0.0
    %905 = vmatprep.subr.mxu0 0.0
    %906 = vmatpush1.xpose.msra.mxu0 0.0
    %907 = vmatprep.subr.mxu0 0.0
    %908 = vmatpush1.xpose.msra.mxu0 0.0
    %909 = vmatprep.subr.mxu0 0.0
    %910 = vmatpush1.xpose.msra.mxu0 0.0
    %911 = vmatprep.subr.mxu0 0.0
    %912 = vmatpush1.xpose.msra.mxu0 0.0
    %913 = vmatprep.subr.mxu0 0.0
    %914 = vmatpush1.xpose.msra.mxu0 0.0
    %915 = vmatprep.subr.mxu0 0.0
    %916 = vmatpush1.xpose.msra.mxu0 0.0
    %917 = vmatprep.subr.mxu0 0.0
    %918 = vmatpush1.xpose.msra.mxu0 0.0
    %919 = vmatprep.subr.mxu0 0.0
    %920 = vmatpush1.xpose.msra.mxu0 0.0
    %921 = vmatprep.subr.mxu0 0.0
    %922 = vmatpush1.xpose.msra.mxu0 0.0
    %923 = vmatprep.subr.mxu0 0.0
    %924 = vmatpush1.xpose.msra.mxu0 0.0
    %925 = vmatprep.subr.mxu0 0.0
    %926 = vmatpush1.xpose.msra.mxu0 0.0
    %927 = vmatprep.subr.mxu0 0.0
    %928 = vmatpush1.xpose.msra.mxu0 0.0
    %929 = vmatprep.subr.mxu0 0.0
    %930 = vmatpush1.xpose.msra.mxu0 0.0
    %931 = vmatprep.subr.mxu0 0.0
    %932 = vmatpush1.xpose.msra.mxu0 0.0
    %933 = vmatprep.subr.mxu0 0.0
    %934 = vmatpush1.xpose.msra.mxu0 0.0
    %935 = vmatprep.subr.mxu0 0.0
    %936 = vmatpush1.xpose.msra.mxu0 0.0
    %937 = vmatprep.subr.mxu0 0.0
    %938 = vmatpush1.xpose.msra.mxu0 0.0
    %939 = vmatprep.subr.mxu0 0.0
    %940 = vmatpush1.xpose.msra.mxu0 0.0
    %941 = vmatprep.subr.mxu0 0.0
    %942 = vmatpush1.xpose.msra.mxu0 0.0
    %943 = vmatprep.subr.mxu0 0.0
    %944 = vmatpush1.xpose.msra.mxu0 0.0
    %945 = vmatprep.mubr.f32.mxu0 0.0
    %v946 = vand.u32 %v613, 4294901760
    %v947 = vsub.f32 %v613, %v946
    %v948 = vand.u32 %v947, 4294901760
    %949 = vmatmul.mubr.f32.gmra.mrb[0].mxu0 %v948
    %v950 = vpop.f32.mrb[0].mxu0
    %v951 = vadd.f32 %v874, %v950
    %v952 = vpop.f32.mrb[0].mxu0
    %953 = vdwg.mxu0
    %954 = vmatprep.subr.mxu0 0.0
    %v955 = vand.u32 %v616, 4294901760
    %v956 = vsub.f32 %v616, %v955
    %v957 = vand.u32 %v956, 4294901760
    %958 = vmatpush1.xpose.msra.mxu0 %v957
    %959 = vmatprep.subr.mxu0 0.0
    %v960 = vand.u32 %v619, 4294901760
    %v961 = vsub.f32 %v619, %v960
    %v962 = vand.u32 %v961, 4294901760
    %963 = vmatpush1.xpose.msra.mxu0 %v962
    %964 = vmatprep.subr.mxu0 0.0
    %v965 = vand.u32 %v622, 4294901760
    %v966 = vsub.f32 %v622, %v965
    %v967 = vand.u32 %v966, 4294901760
    %968 = vmatpush1.xpose.msra.mxu0 %v967
    %969 = vmatprep.subr.mxu0 0.0
    %v970 = vand.u32 %v625, 4294901760
    %v971 = vsub.f32 %v625, %v970
    %v972 = vand.u32 %v971, 4294901760
    %973 = vmatpush1.xpose.msra.mxu0 %v972
    %974 = vmatprep.subr.mxu0 0.0
    %975 = vmatpush1.xpose.msra.mxu0 0.0
    %976 = vmatprep.subr.mxu0 0.0
    %977 = vmatpush1.xpose.msra.mxu0 0.0
    %978 = vmatprep.subr.mxu0 0.0
    %979 = vmatpush1.xpose.msra.mxu0 0.0
    %980 = vmatprep.subr.mxu0 0.0
    %981 = vmatpush1.xpose.msra.mxu0 0.0
    %982 = vmatprep.subr.mxu0 0.0
    %983 = vmatpush1.xpose.msra.mxu0 0.0
    %984 = vmatprep.subr.mxu0 0.0
    %985 = vmatpush1.xpose.msra.mxu0 0.0
    %986 = vmatprep.subr.mxu0 0.0
    %987 = vmatpush1.xpose.msra.mxu0 0.0
    %988 = vmatprep.subr.mxu0 0.0
    %989 = vmatpush1.xpose.msra.mxu0 0.0
    %990 = vmatprep.subr.mxu0 0.0
    %991 = vmatpush1.xpose.msra.mxu0 0.0
    %992 = vmatprep.subr.mxu0 0.0
    %993 = vmatpush1.xpose.msra.mxu0 0.0
    %994 = vmatprep.subr.mxu0 0.0
    %995 = vmatpush1.xpose.msra.mxu0 0.0
    %996 = vmatprep.subr.mxu0 0.0
    %997 = vmatpush1.xpose.msra.mxu0 0.0
    %998 = vmatprep.subr.mxu0 0.0
    %999 = vmatpush1.xpose.msra.mxu0 0.0
    %1000 = vmatprep.subr.mxu0 0.0
    %1001 = vmatpush1.xpose.msra.mxu0 0.0
    %1002 = vmatprep.subr.mxu0 0.0
    %1003 = vmatpush1.xpose.msra.mxu0 0.0
    %1004 = vmatprep.subr.mxu0 0.0
    %1005 = vmatpush1.xpose.msra.mxu0 0.0
    %1006 = vmatprep.subr.mxu0 0.0
    %1007 = vmatpush1.xpose.msra.mxu0 0.0
    %1008 = vmatprep.subr.mxu0 0.0
    %1009 = vmatpush1.xpose.msra.mxu0 0.0
    %1010 = vmatprep.subr.mxu0 0.0
    %1011 = vmatpush1.xpose.msra.mxu0 0.0
    %1012 = vmatprep.subr.mxu0 0.0
    %1013 = vmatpush1.xpose.msra.mxu0 0.0
    %1014 = vmatprep.subr.mxu0 0.0
    %1015 = vmatpush1.xpose.msra.mxu0 0.0
    %1016 = vmatprep.subr.mxu0 0.0
    %1017 = vmatpush1.xpose.msra.mxu0 0.0
    %1018 = vmatprep.subr.mxu0 0.0
    %1019 = vmatpush1.xpose.msra.mxu0 0.0
    %1020 = vmatprep.subr.mxu0 0.0
    %1021 = vmatpush1.xpose.msra.mxu0 0.0
    %1022 = vmatprep.subr.mxu0 0.0
    %1023 = vmatpush1.xpose.msra.mxu0 0.0
    %1024 = vmatprep.subr.mxu0 0.0
    %1025 = vmatpush1.xpose.msra.mxu0 0.0
    %1026 = vmatprep.subr.mxu0 0.0
    %1027 = vmatpush1.xpose.msra.mxu0 0.0
    %1028 = vmatprep.subr.mxu0 0.0
    %1029 = vmatpush1.xpose.msra.mxu0 0.0
    %1030 = vmatprep.mubr.f32.mxu0 0.0
    %v1031 = vand.u32 %v613, 4294901760
    %1032 = vmatmul.mubr.f32.gmra.mrb[0].mxu0 %v1031
    %v1033 = vpop.f32.mrb[0].mxu0
    %v1034 = vadd.f32 %v951, %v1033
    %v1035 = vpop.f32.mrb[0].mxu0
    %1036 = vdwg.mxu0
    %1037 = vmatprep.subr.mxu0 0.0
    %v1038 = vand.u32 %v616, 4294901760
    %1039 = vmatpush1.xpose.msra.mxu0 %v1038
    %1040 = vmatprep.subr.mxu0 0.0
    %v1041 = vand.u32 %v619, 4294901760
    %1042 = vmatpush1.xpose.msra.mxu0 %v1041
    %1043 = vmatprep.subr.mxu0 0.0
    %v1044 = vand.u32 %v622, 4294901760
    %1045 = vmatpush1.xpose.msra.mxu0 %v1044
    %1046 = vmatprep.subr.mxu0 0.0
    %v1047 = vand.u32 %v625, 4294901760
    %1048 = vmatpush1.xpose.msra.mxu0 %v1047
    %1049 = vmatprep.subr.mxu0 0.0
    %1050 = vmatpush1.xpose.msra.mxu0 0.0
    %1051 = vmatprep.subr.mxu0 0.0
    %1052 = vmatpush1.xpose.msra.mxu0 0.0
    %1053 = vmatprep.subr.mxu0 0.0
    %1054 = vmatpush1.xpose.msra.mxu0 0.0
    %1055 = vmatprep.subr.mxu0 0.0
    %1056 = vmatpush1.xpose.msra.mxu0 0.0
    %1057 = vmatprep.subr.mxu0 0.0
    %1058 = vmatpush1.xpose.msra.mxu0 0.0
    %1059 = vmatprep.subr.mxu0 0.0
    %1060 = vmatpush1.xpose.msra.mxu0 0.0
    %1061 = vmatprep.subr.mxu0 0.0
    %1062 = vmatpush1.xpose.msra.mxu0 0.0
    %1063 = vmatprep.subr.mxu0 0.0
    %1064 = vmatpush1.xpose.msra.mxu0 0.0
    %1065 = vmatprep.subr.mxu0 0.0
    %1066 = vmatpush1.xpose.msra.mxu0 0.0
    %1067 = vmatprep.subr.mxu0 0.0
    %1068 = vmatpush1.xpose.msra.mxu0 0.0
    %1069 = vmatprep.subr.mxu0 0.0
    %1070 = vmatpush1.xpose.msra.mxu0 0.0
    %1071 = vmatprep.subr.mxu0 0.0
    %1072 = vmatpush1.xpose.msra.mxu0 0.0
    %1073 = vmatprep.subr.mxu0 0.0
    %1074 = vmatpush1.xpose.msra.mxu0 0.0
    %1075 = vmatprep.subr.mxu0 0.0
    %1076 = vmatpush1.xpose.msra.mxu0 0.0
    %1077 = vmatprep.subr.mxu0 0.0
    %1078 = vmatpush1.xpose.msra.mxu0 0.0
    %1079 = vmatprep.subr.mxu0 0.0
    %1080 = vmatpush1.xpose.msra.mxu0 0.0
    %1081 = vmatprep.subr.mxu0 0.0
    %1082 = vmatpush1.xpose.msra.mxu0 0.0
    %1083 = vmatprep.subr.mxu0 0.0
    %1084 = vmatpush1.xpose.msra.mxu0 0.0
    %1085 = vmatprep.subr.mxu0 0.0
    %1086 = vmatpush1.xpose.msra.mxu0 0.0
    %1087 = vmatprep.subr.mxu0 0.0
    %1088 = vmatpush1.xpose.msra.mxu0 0.0
    %1089 = vmatprep.subr.mxu0 0.0
    %1090 = vmatpush1.xpose.msra.mxu0 0.0
    %1091 = vmatprep.subr.mxu0 0.0
    %1092 = vmatpush1.xpose.msra.mxu0 0.0
    %1093 = vmatprep.subr.mxu0 0.0
    %1094 = vmatpush1.xpose.msra.mxu0 0.0
    %1095 = vmatprep.subr.mxu0 0.0
    %1096 = vmatpush1.xpose.msra.mxu0 0.0
    %1097 = vmatprep.subr.mxu0 0.0
    %1098 = vmatpush1.xpose.msra.mxu0 0.0
    %1099 = vmatprep.subr.mxu0 0.0
    %1100 = vmatpush1.xpose.msra.mxu0 0.0
    %1101 = vmatprep.subr.mxu0 0.0
    %1102 = vmatpush1.xpose.msra.mxu0 0.0
    %1103 = vmatprep.subr.mxu0 0.0
    %1104 = vmatpush1.xpose.msra.mxu0 0.0
    %1105 = vmatprep.mubr.f32.mxu0 0.0
    %v1106 = vand.u32 %v613, 4294901760
    %1107 = vmatmul.mubr.f32.gmra.mrb[0].mxu0 %v1106
    %v1108 = vpop.f32.mrb[0].mxu0
    %v1109 = vadd.f32 %v1034, %v1108
    %v1110 = vpop.f32.mrb[0].mxu0
    %1111 = vdwg.mxu0
    %v1112 = vxor.u32 %v1109, 2147483648
    %v1113 = vmul.f32 %v1112, 1.442695
    %v1114 = vpow.pop %v1113
    %v1115 = vadd.f32 %v1114, 1.0
    %v1116 = vrcp.pop %v1115
    %v1117 = vmul.f32 1.0, %v1116
    %v1118 = vlaneseq
    %v1119 = vshrl.u32 %v1118, 7
    %v1120 = vsub.s32 0, %v1119
    %v1121 = vrot.slane %v1117, %v1120
    %1123 = vbcast.lane.b32.xlu0 %v1121, 256
    %v1124 = vpop.permute.xlu0 %1123
    %s1126 = sor.u32 256, 8
    %1127 = vbcast.lane.b32.xlu0 %v1121, %s1126
    %v1128 = vpop.permute.xlu0 %1127
    %s1130 = sor.u32 256, 16
    %1131 = vbcast.lane.b32.xlu0 %v1121, %s1130
    %v1132 = vpop.permute.xlu0 %1131
    %s1134 = sor.u32 256, 24
    %1135 = vbcast.lane.b32.xlu0 %v1121, %s1134
    %v1136 = vpop.permute.xlu0 %1135
    %v1137 = vlaneseq
    %v1138 = vshrl.u32 %v1137, 7
    %v1139 = vsub.s32 1, %v1138
    %v1140 = vrot.slane %v1117, %v1139
    %1142 = vbcast.lane.b32.xlu0 %v1140, 256
    %v1143 = vpop.permute.xlu0 %1142
    %s1145 = sor.u32 256, 8
    %1146 = vbcast.lane.b32.xlu0 %v1140, %s1145
    %v1147 = vpop.permute.xlu0 %1146
    %s1149 = sor.u32 256, 16
    %1150 = vbcast.lane.b32.xlu0 %v1140, %s1149
    %v1151 = vpop.permute.xlu0 %1150
    %s1153 = sor.u32 256, 24
    %1154 = vbcast.lane.b32.xlu0 %v1140, %s1153
    %v1155 = vpop.permute.xlu0 %1154
    %v1156 = vmul.f32 %v35, %v1124
    %v1157 = vmul.f32 %v36, %v1124
    %v1158 = vmul.f32 %v37, %v1128
    %v1159 = vmul.f32 %v38, %v1128
    %v1160 = vmul.f32 %v39, %v1132
    %v1161 = vmul.f32 %v40, %v1132
    %v1162 = vmul.f32 %v41, %v1136
    %v1163 = vmul.f32 %v42, %v1136
    %v1164 = vmul.f32 %v43, %v1143
    %v1165 = vmul.f32 %v44, %v1143
    %v1166 = vmul.f32 %v45, %v1147
    %v1167 = vmul.f32 %v46, %v1147
    %v1168 = vmul.f32 %v47, %v1151
    %v1169 = vmul.f32 %v48, %v1151
    %v1170 = vmul.f32 %v49, %v1155
    %v1171 = vmul.f32 %v50, %v1155
    %1172 = vst [vmem:[#allocation5] sm:$0xff] %v1156
    %1173 = vst [vmem:[#allocation5 + $0x8] sm:$0xff] %v1157
    %1174 = vst [vmem:[#allocation5 + $0x10] sm:$0xff] %v1158
    %1175 = vst [vmem:[#allocation5 + $0x18] sm:$0xff] %v1159
    %1176 = vst [vmem:[#allocation5 + $0x20] sm:$0xff] %v1160
    %1177 = vst [vmem:[#allocation5 + $0x28] sm:$0xff] %v1161
    %1178 = vst [vmem:[#allocation5 + $0x30] sm:$0xff] %v1162
    %1179 = vst [vmem:[#allocation5 + $0x38] sm:$0xff] %v1163
    %1180 = vst [vmem:[#allocation5 + $0x40] sm:$0xff] %v1164
    %1181 = vst [vmem:[#allocation5 + $0x48] sm:$0xff] %v1165
    %1182 = vst [vmem:[#allocation5 + $0x50] sm:$0xff] %v1166
    %1183 = vst [vmem:[#allocation5 + $0x58] sm:$0xff] %v1167
    %1184 = vst [vmem:[#allocation5 + $0x60] sm:$0xff] %v1168
    %1185 = vst [vmem:[#allocation5 + $0x68] sm:$0xff] %v1169
    %1186 = vst [vmem:[#allocation5 + $0x70] sm:$0xff] %v1170
    %1187 = vst [vmem:[#allocation5 + $0x78] sm:$0xff] %v1171
    // Predicated region
    $region26: #{tpu_custom_call.1} parent=1 // pred_check
      _
    $region27: #{tpu_custom_call.1} parent=1 // pred_check_branch
      %1189 = sbr.rel (0) target = $region29
    $region28: #{tpu_custom_call.1} parent=1 // pred_region
      %s1191 = ssub.s32 2048, 2048
      %1192 = vsyncadd [#allocation4], %s1191
      %s1193 = sshll.u32 [#allocation5], 4
      %s1194 = int_to_ptr.vmem [resolvable:$true] %s1193
      %1199 = dma.vmem_to_hbm [thread:$0]  %s1194, 2048, %s5, [#allocation4], 256, 256, 16
    $region29: #{tpu_custom_call.1} parent=1 // pred_fallthru
      _
    // Predicated region
    $region30: #{tpu_custom_call.1} parent=1 // pred_check
      _
    $region31: #{tpu_custom_call.1} parent=1 // pred_check_branch
      %1201 = sbr.rel (0) target = $region33
    $region32: #{tpu_custom_call.1} parent=1 // pred_region
      %1202 = dma.done [#allocation4], 2048
    $region33: #{tpu_custom_call.1} parent=1 // pred_fallthru
      _
    %1203 = vsyncpa [#allocation3], 1
    %1204 = vsyncpa [#allocation4], 1

</llo_original>
